<compile_context>
chip_gen: v7x
topology: tpu7x:2x2x1
jax: 0.10.0
libtpu: 0.0.40
codegen_flags: <defaults>
</compile_context>

<pallas_src>
import jax
import jax.numpy as jnp
from jax.experimental import pallas as pl
from jax.experimental.pallas import tpu as pltpu


def _round_up(x: int, m: int) -> int:
    return ((x + m - 1) // m) * m


def _gelu_exact(x):
    # PyTorch F.gelu default = exact erf formulation (done in f32).
    return 0.5 * x * (1.0 + jax.lax.erf(x * 0.7071067811865476))


# ------------------------------- kernels ------------------------------------

def gelu_mlp_kernel_out_acc(x_ref, w1_ref, b1_ref, w2_ref, b2_ref, o_ref):
    """f32-output variant: accumulate directly into the resident output block.

    x_ref : (tm, Ep)   activations tile (compute dtype)
    w1_ref: (Ep, th)   fc weight tile, (in, out) layout
    b1_ref: (1, th)    fc bias tile (f32)
    w2_ref: (th, Ep)   proj weight tile, (in, out) layout
    b2_ref: (1, Ep)    proj bias (f32)
    o_ref : (tm, Ep)   f32 output block (resident across the h axis)
    """
    h_idx = pl.program_id(1)

    @pl.when(h_idx == 0)
    def _():
        o_ref[...] = jnp.broadcast_to(b2_ref[...], o_ref.shape)

    hidden = jnp.dot(x_ref[...], w1_ref[...],
                     preferred_element_type=jnp.float32) + b1_ref[...]
    g = _gelu_exact(hidden)                                     # f32
    o_ref[...] += jnp.dot(g.astype(w2_ref.dtype), w2_ref[...],
                          preferred_element_type=jnp.float32)


def gelu_mlp_kernel_acc(x_ref, w1_ref, b1_ref, w2_ref, b2_ref, o_ref, acc_ref):
    """Generic-output variant: f32 scratch accumulator, cast on last h step."""
    h_idx = pl.program_id(1)

    @pl.when(h_idx == 0)
    def _():
        acc_ref[...] = jnp.broadcast_to(b2_ref[...], acc_ref.shape)

    hidden = jnp.dot(x_ref[...], w1_ref[...],
                     preferred_element_type=jnp.float32) + b1_ref[...]
    g = _gelu_exact(hidden)
    acc_ref[...] += jnp.dot(g.astype(w2_ref.dtype), w2_ref[...],
                            preferred_element_type=jnp.float32)

    @pl.when(h_idx == pl.num_programs(1) - 1)
    def _():
        o_ref[...] = acc_ref[...].astype(o_ref.dtype)


# ------------------------------- wrapper -------------------------------------

def _vmem_capacity_bytes() -> int:
    try:
        info = pltpu.get_tpu_info()
        cap = getattr(info, "vmem_capacity_bytes", None)
        if cap:
            return int(cap)
    except Exception:
        pass
    return 128 * 1024 * 1024   # conservative fallback (v5e/v6e)


def _vmem_need_bytes(tm, th, Ep, compute_isz, out_isz, use_acc_scratch):
    need = (2 * tm * Ep * compute_isz        # x tiles (double-buffered)
            + 2 * Ep * th * compute_isz      # w1 tiles
            + 2 * th * Ep * compute_isz      # w2 tiles
            + 2 * 8 * th * 4                 # b1 tiles (sublane-padded)
            + 2 * 8 * Ep * 4                 # b2 tiles
            + 2 * tm * Ep * out_isz)         # output block(s)
    if use_acc_scratch:
        need += tm * Ep * 4                  # f32 accumulator scratch
    return need


def prepare_gelu_mlp_params(w_fc, b_fc, w_proj, b_proj, *,
                            compute_dtype=jnp.bfloat16):
    """One-time parameter prep: transpose PyTorch (out, in) -> (in, out), cast.

    w_fc   : (H, E)   nn.Linear weight layout (out_features, in_features)
    b_fc   : (H,)  or None
    w_proj : (E, H)
    b_proj : (E,)  or None
    """
    w_fc = jnp.asarray(w_fc)
    w_proj = jnp.asarray(w_proj)
    H, E = w_fc.shape
    if b_fc is None:
        b_fc = jnp.zeros((H,), jnp.float32)
    if b_proj is None:
        b_proj = jnp.zeros((E,), jnp.float32)
    return dict(
        w1=w_fc.T.astype(compute_dtype),               # (E, H)
        b1=jnp.asarray(b_fc).astype(jnp.float32).reshape(1, H),
        w2=w_proj.T.astype(compute_dtype),             # (H, E)
        b2=jnp.asarray(b_proj).astype(jnp.float32).reshape(1, E),
    )


def gelu_mlp(x, params, *, tm=None, th=None):
    """Fused MLP:  proj(gelu(fc(x))), using params from prepare_gelu_mlp_params.

    x: (..., E).  Output has x's dtype; matmuls run in params' compute dtype
    (default bf16) with f32 accumulation, bias and GELU.
    """
    w1, b1, w2, b2 = params["w1"], params["b1"], params["w2"], params["b2"]
    orig_shape = x.shape
    out_dtype = x.dtype
    E = orig_shape[-1]
    H = w1.shape[1]
    assert w1.shape[0] == E and w2.shape == (H, E)
    compute_dtype = w1.dtype

    x2d = x.reshape(-1, E).astype(compute_dtype)
    M = x2d.shape[0]

    use_acc_scratch = jnp.dtype(out_dtype) != jnp.dtype(jnp.float32)

    # Generation-aware VMEM budget: ~80% of physical per-core VMEM
    # (~51 MiB on v7x, ~102 MiB on v5e/v6e) leaves headroom for internal scratch.
    capacity = _vmem_capacity_bytes()
    budget = (capacity * 4) // 5

    Ep = _round_up(E, 128)
    c_isz = jnp.dtype(compute_dtype).itemsize
    o_isz = jnp.dtype(out_dtype).itemsize

    big_vmem = capacity >= (96 << 20)
    tm_eff = tm if tm is not None else (512 if big_vmem else 256)
    th_eff = th if th is not None else (1024 if big_vmem else 512)
    tm_eff = _round_up(min(tm_eff, _round_up(M, 8)), 8)
    th_eff = _round_up(min(th_eff, _round_up(H, 128)), 128)

    # Shrink tiles until they fit the budget (only triggers for very large E).
    while _vmem_need_bytes(tm_eff, th_eff, Ep, c_isz, o_isz,
                           use_acc_scratch) > budget:
        if th_eff > 256 and th_eff >= tm_eff:
            th_eff = _round_up(th_eff // 2, 128)
        elif tm_eff > 256:
            tm_eff = _round_up(tm_eff // 2, 8)
        elif th_eff > 128:
            th_eff = _round_up(th_eff // 2, 128)
        elif tm_eff > 8:
            tm_eff = _round_up(tm_eff // 2, 8)
        else:
            break

    Mp = _round_up(M, tm_eff)
    Hp = _round_up(H, th_eff)

    def pad2(a, rows, cols):
        pr, pc = rows - a.shape[0], cols - a.shape[1]
        if pr or pc:
            a = jnp.pad(a, ((0, pr), (0, pc)))
        return a

    xp = pad2(x2d, Mp, Ep)                 # (Mp, Ep)
    w1p = pad2(w1, Ep, Hp)                 # (Ep, Hp)
    w2p = pad2(w2, Hp, Ep)                 # (Hp, Ep)
    b1p = pad2(b1, 1, Hp)                  # (1, Hp) f32
    b2p = pad2(b2, 1, Ep)                  # (1, Ep) f32

    grid = (Mp // tm_eff, Hp // th_eff)
    n_m_tiles = grid[0]

    need = _vmem_need_bytes(tm_eff, th_eff, Ep, c_isz, o_isz, use_acc_scratch)
    vmem_limit = int(min(budget, max(need + (4 << 20), 32 << 20)))

    cost = pl.CostEstimate(
        flops=4 * M * E * H,                     # two matmuls, 2*M*E*H each
        transcendentals=M * H,                   # erf per hidden activation
        bytes_accessed=int(
            xp.nbytes
            + n_m_tiles * (w1p.nbytes + w2p.nbytes + b1p.nbytes + b2p.nbytes)
            + Mp * Ep * o_isz),
    )

    if use_acc_scratch:
        kernel = gelu_mlp_kernel_acc
        scratch_shapes = [pltpu.VMEM((tm_eff, Ep), jnp.float32)]
    else:
        kernel = gelu_mlp_kernel_out_acc
        scratch_shapes = []

    out_p = pl.pallas_call(
        kernel,
        out_shape=jax.ShapeDtypeStruct((Mp, Ep), out_dtype),
        grid_spec=pltpu.PrefetchScalarGridSpec(
            num_scalar_prefetch=0,
            grid=grid,
            in_specs=[
                pl.BlockSpec((tm_eff, Ep), lambda i, h: (i, 0)),   # x tile
                pl.BlockSpec((Ep, th_eff), lambda i, h: (0, h)),   # fc weight
                pl.BlockSpec((1, th_eff), lambda i, h: (0, h)),    # fc bias
                pl.BlockSpec((th_eff, Ep), lambda i, h: (h, 0)),   # proj weight
                pl.BlockSpec((1, Ep), lambda i, h: (0, 0)),        # proj bias
            ],
            out_specs=pl.BlockSpec((tm_eff, Ep), lambda i, h: (i, 0)),
            scratch_shapes=scratch_shapes,
        ),
        compiler_params=pltpu.CompilerParams(
            # TODO(synk): verify the M axis engages both TensorCores on v7x;
            # switch to pltpu.CORE_PARALLEL on axis 0 if a trace shows one idle.
            dimension_semantics=("parallel", "arbitrary"),
            vmem_limit_bytes=vmem_limit,
        ),
        cost_estimate=cost,
    )(xp, w1p, b1p, w2p, b2p)

    return out_p[:M, :E].reshape(orig_shape)


# ------------------------------- demo ----------------------------------------

if __name__ == "__main__":
    # Small shapes consistent with the module: batch=2, seq=8, embed=32, hidden=64.
    batch, seq, embed_dim, hidden_dim = 2, 8, 32, 64

    key = jax.random.PRNGKey(0)
    kx, k1, k2, k3, k4 = jax.random.split(key, 5)

    x = jax.random.normal(kx, (batch, seq, embed_dim), dtype=jnp.float32)
    # PyTorch nn.Linear weight layout: (out_features, in_features).
    w_fc = jax.random.normal(k1, (hidden_dim, embed_dim), jnp.float32) * 0.05
    b_fc = jax.random.normal(k2, (hidden_dim,), jnp.float32) * 0.05
    w_proj = jax.random.normal(k3, (embed_dim, hidden_dim), jnp.float32) * 0.05
    b_proj = jax.random.normal(k4, (embed_dim,), jnp.float32) * 0.05

    # Pure-JAX reference (exact GELU, matching PyTorch F.gelu default).
    h_ref = x @ w_fc.T + b_fc
    h_ref = 0.5 * h_ref * (1.0 + jax.lax.erf(h_ref / jnp.sqrt(2.0)))
    ref = h_ref @ w_proj.T + b_proj

    # 1) Default path: bf16 compute, f32 output (accumulates into output block).
    params_bf16 = prepare_gelu_mlp_params(w_fc, b_fc, w_proj, b_proj,
                                          compute_dtype=jnp.bfloat16)
    out_bf16 = jax.block_until_ready(gelu_mlp(x, params_bf16))
    assert out_bf16.shape == (batch, seq, embed_dim)
    assert jnp.allclose(out_bf16, ref, atol=3e-2, rtol=3e-2), (
        float(jnp.max(jnp.abs(out_bf16 - ref))))

    # 2) f32 compute path: tight numeric check against the f32 reference.
    params_f32 = prepare_gelu_mlp_params(w_fc, b_fc, w_proj, b_proj,
                                         compute_dtype=jnp.float32)
    out_f32 = jax.block_until_ready(gelu_mlp(x, params_f32))
    assert jnp.allclose(out_f32, ref, atol=2e-5, rtol=1e-5), (
        float(jnp.max(jnp.abs(out_f32 - ref))))

    # 3) bf16 activations (exercises the scratch-accumulator kernel variant).
    out_b = jax.block_until_ready(gelu_mlp(x.astype(jnp.bfloat16), params_bf16))
    assert out_b.dtype == jnp.bfloat16
    assert jnp.allclose(out_b.astype(jnp.float32), ref, atol=5e-2, rtol=5e-2), (
        float(jnp.max(jnp.abs(out_b.astype(jnp.float32) - ref))))

    print("KERNEL_OK")
</pallas_src>

<mosaic_0001>
module attributes {stable_mosaic.version = 11 : i64} {
  func.func @gelu_mlp_kernel_out_acc(%arg0: i32, %arg1: i32, %arg2: memref<16x128xbf16, #tpu.memory_space<vmem>>, %arg3: memref<128x128xbf16, #tpu.memory_space<vmem>>, %arg4: memref<1x128xf32, #tpu.memory_space<vmem>>, %arg5: memref<128x128xbf16, #tpu.memory_space<vmem>>, %arg6: memref<1x128xf32, #tpu.memory_space<vmem>>, %arg7: memref<16x128xf32, #tpu.memory_space<vmem>>) attributes {dimension_semantics = [#tpu.dimension_semantics<parallel>, #tpu.dimension_semantics<arbitrary>], iteration_bounds = array<i64: 1, 1>, scalar_prefetch = 0 : i64, scratch_operands = 0 : i64, tpu.core_type = #tpu.core_type<tc>, window_params = [{transform_indices = @transform_0, window_bounds = array<i64: 16, 128>}, {transform_indices = @transform_1, window_bounds = array<i64: 128, 128>}, {transform_indices = @transform_2, window_bounds = array<i64: 1, 128>}, {transform_indices = @transform_3, window_bounds = array<i64: 128, 128>}, {pipeline_mode = #tpu.pipeline_mode<synchronous>, transform_indices = @transform_4, window_bounds = array<i64: 1, 128>}, {transform_indices = @transform_5, window_bounds = array<i64: 16, 128>}]} {
    %c0_i32 = arith.constant 0 : i32
    %0 = arith.cmpi eq, %arg1, %c0_i32 : i32
    %1 = arith.extui %0 : i1 to i32
    %c0_i32_0 = arith.constant 0 : i32
    %2 = arith.cmpi ne, %1, %c0_i32_0 : i32
    scf.if %2 {
      %c0_16 = arith.constant 0 : index
      %c0_17 = arith.constant 0 : index
      %23 = vector.load %arg6[%c0_16, %c0_17] : memref<1x128xf32, #tpu.memory_space<vmem>>, vector<1x128xf32>
      %24 = vector.shape_cast %23 : vector<1x128xf32> to vector<1x128xf32>
      %25 = vector.broadcast %24 : vector<1x128xf32> to vector<16x128xf32>
      %c0_18 = arith.constant 0 : index
      %c0_19 = arith.constant 0 : index
      %26 = vector.load %arg7[%c0_18, %c0_19] : memref<16x128xf32, #tpu.memory_space<vmem>>, vector<16x128xf32>
      tpu.vector_store %arg7[%c0_18, %c0_19], %25 {strides = array<i32>} : memref<16x128xf32, #tpu.memory_space<vmem>>, vector<16x128xf32>,
    } else {
    }
    %c0 = arith.constant 0 : index
    %c0_1 = arith.constant 0 : index
    %3 = vector.load %arg2[%c0, %c0_1] : memref<16x128xbf16, #tpu.memory_space<vmem>>, vector<16x128xbf16>
    %c0_2 = arith.constant 0 : index
    %c0_3 = arith.constant 0 : index
    %4 = vector.load %arg3[%c0_2, %c0_3] : memref<128x128xbf16, #tpu.memory_space<vmem>>, vector<128x128xbf16>
    %cst = arith.constant dense<0.000000e+00> : vector<16x128xf32>
    %5 = tpu.matmul %3, %4, %cst {dimension_numbers = #tpu.dot_dimension_numbers<[1], [0], [0], [1], [0, 0, 1, 1], [], []>} : vector<16x128xbf16>, vector<128x128xbf16>, vector<16x128xf32> -> vector<16x128xf32>
    %c0_4 = arith.constant 0 : index
    %c0_5 = arith.constant 0 : index
    %6 = vector.load %arg4[%c0_4, %c0_5] : memref<1x128xf32, #tpu.memory_space<vmem>>, vector<1x128xf32>
    %7 = vector.broadcast %6 : vector<1x128xf32> to vector<16x128xf32>
    %8 = arith.addf %5, %7 : vector<16x128xf32>
    %cst_6 = arith.constant 5.000000e-01 : f32
    %9 = vector.broadcast %cst_6 : f32 to vector<16x128xf32>
    %10 = arith.mulf %9, %8 : vector<16x128xf32>
    %cst_7 = arith.constant 0.707106769 : f32
    %11 = vector.broadcast %cst_7 : f32 to vector<16x128xf32>
    %12 = arith.mulf %8, %11 : vector<16x128xf32>
    %13 = math.erf %12 : vector<16x128xf32>
    %cst_8 = arith.constant 1.000000e+00 : f32
    %14 = vector.broadcast %cst_8 : f32 to vector<16x128xf32>
    %15 = arith.addf %14, %13 : vector<16x128xf32>
    %16 = arith.mulf %10, %15 : vector<16x128xf32>
    %c0_9 = arith.constant 0 : index
    %c0_10 = arith.constant 0 : index
    %17 = vector.load %arg7[%c0_9, %c0_10] : memref<16x128xf32, #tpu.memory_space<vmem>>, vector<16x128xf32>
    %18 = arith.truncf %16 : vector<16x128xf32> to vector<16x128xbf16>
    %c0_11 = arith.constant 0 : index
    %c0_12 = arith.constant 0 : index
    %19 = vector.load %arg5[%c0_11, %c0_12] : memref<128x128xbf16, #tpu.memory_space<vmem>>, vector<128x128xbf16>
    %cst_13 = arith.constant dense<0.000000e+00> : vector<16x128xf32>
    %20 = tpu.matmul %18, %19, %cst_13 {dimension_numbers = #tpu.dot_dimension_numbers<[1], [0], [0], [1], [0, 0, 1, 1], [], []>} : vector<16x128xbf16>, vector<128x128xbf16>, vector<16x128xf32> -> vector<16x128xf32>
    %21 = arith.addf %17, %20 : vector<16x128xf32>
    %c0_14 = arith.constant 0 : index
    %c0_15 = arith.constant 0 : index
    %22 = vector.load %arg7[%c0_14, %c0_15] : memref<16x128xf32, #tpu.memory_space<vmem>>, vector<16x128xf32>
    tpu.vector_store %arg7[%c0_14, %c0_15], %21 {strides = array<i32>} : memref<16x128xf32, #tpu.memory_space<vmem>>, vector<16x128xf32>,
    return
  }
  func.func @transform_0(%arg0: i32, %arg1: i32) -> (i32, i32) {
    %c0_i32 = arith.constant 0 : i32
    %c0_i32_0 = arith.constant 0 : i32
    return %arg0, %c0_i32 : i32, i32
  }
  func.func @transform_1(%arg0: i32, %arg1: i32) -> (i32, i32) {
    %c0_i32 = arith.constant 0 : i32
    %c0_i32_0 = arith.constant 0 : i32
    return %c0_i32, %arg1 : i32, i32
  }
  func.func @transform_2(%arg0: i32, %arg1: i32) -> (i32, i32) {
    %c0_i32 = arith.constant 0 : i32
    %c0_i32_0 = arith.constant 0 : i32
    return %c0_i32, %arg1 : i32, i32
  }
  func.func @transform_3(%arg0: i32, %arg1: i32) -> (i32, i32) {
    %c0_i32 = arith.constant 0 : i32
    %c0_i32_0 = arith.constant 0 : i32
    return %arg1, %c0_i32 : i32, i32
  }
  func.func @transform_4(%arg0: i32, %arg1: i32) -> (i32, i32) {
    %c0_i32 = arith.constant 0 : i32
    %c0_i32_0 = arith.constant 0 : i32
    %c0_i32_1 = arith.constant 0 : i32
    return %c0_i32, %c0_i32_0 : i32, i32
  }
  func.func @transform_5(%arg0: i32, %arg1: i32) -> (i32, i32) {
    %c0_i32 = arith.constant 0 : i32
    %c0_i32_0 = arith.constant 0 : i32
    return %arg0, %c0_i32 : i32, i32
  }
}

</mosaic_0001>

<llo_original>
// kernel: tpu_custom_call.1
$region0: #{tpu_custom_call.1}
  #allocation0 [shape = 'u32[]', space=smem, size = 0x4, offset = 0x4, fixed_abs, tag = 'smem constant byte address 0x4 - core index']
  #allocation1 [shape = 'u32[144,128]{1,0:T(1,128)}', space=vmem, size = 0x12000, scoped, tag = 'internal scratch']
  %s0 = inlined_call_operand.hbm [shape: bf16[16,128], index: 0, kind: input, shape index: {}]
  %s1 = inlined_call_operand.hbm [shape: bf16[128,128], index: 1, kind: input, shape index: {}]
  %s2 = inlined_call_operand.vmem [shape: f32[1,128], index: 2, kind: input, shape index: {}]
  %s3 = inlined_call_operand.hbm [shape: bf16[128,128], index: 3, kind: input, shape index: {}]
  %s4 = inlined_call_operand.vmem [shape: f32[1,128], index: 4, kind: input, shape index: {}]
  %s5 = inlined_call_operand.hbm [shape: f32[16,128], index: 5, kind: output, shape index: {}]
  %s6 = sld [smem:[#allocation0]]
  $region46: #{tpu_custom_call.1} parent=0
    _
  %s8 = ssub.s32 1, %s6
  %s9 = scalar_select 0, %s8, %s6
  $region1: #{tpu_custom_call.1} parent=0
    #allocation2 [shape = 'u8[4096]{0}', space=vmem, size = 0x1000, scoped, tag = 'input window, operand 0, single buffered']
    #allocation3 [shape = 's32[1]{0}', space=sflag, size = 0x4, scoped, tag = 'scoped memory for tpu_custom_call.1']
    #allocation4 [shape = 's32[1]{0}', space=sflag, size = 0x4, scoped, tag = 'scoped memory for tpu_custom_call.1']
    #allocation5 [shape = 'u8[32768]{0}', space=vmem, size = 0x8000, scoped, tag = 'input window, operand 1, single buffered']
    #allocation6 [shape = 's32[1]{0}', space=sflag, size = 0x4, scoped, tag = 'scoped memory for tpu_custom_call.1']
    #allocation7 [shape = 'u8[32768]{0}', space=vmem, size = 0x8000, scoped, tag = 'input window, operand 3, single buffered']
    #allocation8 [shape = 'u8[8192]{0}', space=vmem, size = 0x2000, scoped, tag = 'output window, operand 0, single buffered']
    %10 = vsyncpa [#allocation3], 0
    %11 = vsyncpa [#allocation6], 0
    %12 = vsyncpa [#allocation4], 0
    // Predicated region
    $region2: #{tpu_custom_call.1} parent=1 // pred_check
      _
    $region3: #{tpu_custom_call.1} parent=1 // pred_check_branch
      %14 = sbr.rel (0) target = $region5
    $region4: #{tpu_custom_call.1} parent=1 // pred_region
      %s16 = ssub.s32 128, 128
      %17 = vsyncadd [#allocation3], %s16
      %s18 = sshll.u32 [#allocation2], 4
      %s19 = int_to_ptr.vmem [resolvable:$true] %s18
      %24 = dma.hbm_to_vmem [thread:$0]  %s0, 128, %s19, [#allocation3], 64, 64, 4
    $region5: #{tpu_custom_call.1} parent=1 // pred_fallthru
      _
    // Predicated region
    $region6: #{tpu_custom_call.1} parent=1 // pred_check
      _
    $region7: #{tpu_custom_call.1} parent=1 // pred_check_branch
      %26 = sbr.rel (0) target = $region9
    $region8: #{tpu_custom_call.1} parent=1 // pred_region
      %s28 = ssub.s32 1024, 1024
      %29 = vsyncadd [#allocation6], %s28
      %s30 = sshll.u32 [#allocation5], 4
      %s31 = int_to_ptr.vmem [resolvable:$true] %s30
      %36 = dma.hbm_to_vmem [thread:$0]  %s1, 1024, %s31, [#allocation6], 64, 64, 4
    $region9: #{tpu_custom_call.1} parent=1 // pred_fallthru
      _
    // Predicated region
    $region10: #{tpu_custom_call.1} parent=1 // pred_check
      _
    $region11: #{tpu_custom_call.1} parent=1 // pred_check_branch
      %38 = sbr.rel (0) target = $region13
    $region12: #{tpu_custom_call.1} parent=1 // pred_region
      _
    $region13: #{tpu_custom_call.1} parent=1 // pred_fallthru
      _
    // Predicated region
    $region14: #{tpu_custom_call.1} parent=1 // pred_check
      _
    $region15: #{tpu_custom_call.1} parent=1 // pred_check_branch
      %40 = sbr.rel (0) target = $region17
    $region16: #{tpu_custom_call.1} parent=1 // pred_region
      %s42 = ssub.s32 1024, 1024
      %43 = vsyncadd [#allocation6], %s42
      %s44 = sshll.u32 [#allocation7], 4
      %s45 = int_to_ptr.vmem [resolvable:$true] %s44
      %50 = dma.hbm_to_vmem [thread:$0]  %s3, 1024, %s45, [#allocation6], 64, 64, 4
    $region17: #{tpu_custom_call.1} parent=1 // pred_fallthru
      _
    // Predicated region
    $region18: #{tpu_custom_call.1} parent=1 // pred_check
      _
    $region19: #{tpu_custom_call.1} parent=1 // pred_check_branch
      %52 = sbr.rel (0) target = $region21
    $region20: #{tpu_custom_call.1} parent=1 // pred_region
      _
    $region21: #{tpu_custom_call.1} parent=1 // pred_fallthru
      _
    // Predicated region
    $region22: #{tpu_custom_call.1} parent=1 // pred_check
      _
    $region23: #{tpu_custom_call.1} parent=1 // pred_check_branch
      %54 = sbr.rel (0) target = $region25
    $region24: #{tpu_custom_call.1} parent=1 // pred_region
      %55 = dma.done [#allocation3], 128
    $region25: #{tpu_custom_call.1} parent=1 // pred_fallthru
      _
    // Predicated region
    $region26: #{tpu_custom_call.1} parent=1 // pred_check
      _
    $region27: #{tpu_custom_call.1} parent=1 // pred_check_branch
      %57 = sbr.rel (0) target = $region29
    $region28: #{tpu_custom_call.1} parent=1 // pred_region
      %58 = dma.done [#allocation6], 1024
    $region29: #{tpu_custom_call.1} parent=1 // pred_fallthru
      _
    // Predicated region
    $region30: #{tpu_custom_call.1} parent=1 // pred_check
      _
    $region31: #{tpu_custom_call.1} parent=1 // pred_check_branch
      %60 = sbr.rel (0) target = $region33
    $region32: #{tpu_custom_call.1} parent=1 // pred_region
      %61 = dma.done [#allocation6], 1024
    $region33: #{tpu_custom_call.1} parent=1 // pred_fallthru
      _
    %p63 = scmp.eq.s32.totalorder 0, 0
    // Predicated region
    $region34: #{tpu_custom_call.1} parent=1 // pred_check
      %p64 = pneg %p63
    $region35: #{tpu_custom_call.1} parent=1 // pred_check_branch
      %66 = sbr.rel (%p64) target = $region37
    $region36: #{tpu_custom_call.1} parent=1 // pred_region
      %v67 = vld [vmem:[%s4] sm:$0x1]
      %v69 = vlaneseq
      %v70 = vshrl.u32 %v69, 7
      %v71 = vsub.s32 0, %v70
      %v72 = vrot.slane %v67, %v71
      %74 = vst [vmem:[#allocation8] sm:$0xff] %v72
      %75 = vst [vmem:[#allocation8 + $0x8] sm:$0xff] %v72
    $region37: #{tpu_custom_call.1} parent=1 // pred_fallthru
      _
    %v76 = vld [vmem:[#allocation2] sm:$0xf]
    %v77 = vld [vmem:[#allocation2 + $0x4] sm:$0xf]
    %v78 = vld [vmem:[#allocation5] sm:$0xf]
    %v79 = vld [vmem:[#allocation5 + $0x4] sm:$0xf]
    %v80 = vld [vmem:[#allocation5 + $0x8] sm:$0xf]
    %v81 = vld [vmem:[#allocation5 + $0xc] sm:$0xf]
    %v82 = vld [vmem:[#allocation5 + $0x10] sm:$0xf]
    %v83 = vld [vmem:[#allocation5 + $0x14] sm:$0xf]
    %v84 = vld [vmem:[#allocation5 + $0x18] sm:$0xf]
    %v85 = vld [vmem:[#allocation5 + $0x1c] sm:$0xf]
    %v86 = vld [vmem:[#allocation5 + $0x20] sm:$0xf]
    %v87 = vld [vmem:[#allocation5 + $0x24] sm:$0xf]
    %v88 = vld [vmem:[#allocation5 + $0x28] sm:$0xf]
    %v89 = vld [vmem:[#allocation5 + $0x2c] sm:$0xf]
    %v90 = vld [vmem:[#allocation5 + $0x30] sm:$0xf]
    %v91 = vld [vmem:[#allocation5 + $0x34] sm:$0xf]
    %v92 = vld [vmem:[#allocation5 + $0x38] sm:$0xf]
    %v93 = vld [vmem:[#allocation5 + $0x3c] sm:$0xf]
    %v94 = vld [vmem:[%s2] sm:$0x1]
    %v96 = vlaneseq
    %v97 = vshrl.u32 %v96, 7
    %v98 = vsub.s32 0, %v97
    %v99 = vrot.slane %v94, %v98
    %v103 = vunpack.c.l.b16 %v76
    %v104 = vunpack.c.l.b16 %v77
    %v105 = vpack.c.b16 %v104, %v103
    %v123 = vunpack.c.l.b16 %v78
    %v124 = vunpack.c.l.b16 %v79
    %v125 = vunpack.c.l.b16 %v80
    %v126 = vunpack.c.l.b16 %v81
    %v127 = vunpack.c.l.b16 %v82
    %v128 = vunpack.c.l.b16 %v83
    %v129 = vunpack.c.l.b16 %v84
    %v130 = vunpack.c.l.b16 %v85
    %v131 = vunpack.c.l.b16 %v86
    %v132 = vunpack.c.l.b16 %v87
    %v133 = vunpack.c.l.b16 %v88
    %v134 = vunpack.c.l.b16 %v89
    %v135 = vunpack.c.l.b16 %v90
    %v136 = vunpack.c.l.b16 %v91
    %v137 = vunpack.c.l.b16 %v92
    %v138 = vunpack.c.l.b16 %v93
    %v139 = vpack.c.b16 %v124, %v123
    %v140 = vpack.c.b16 %v126, %v125
    %v141 = vpack.c.b16 %v128, %v127
    %v142 = vpack.c.b16 %v130, %v129
    %v143 = vpack.c.b16 %v132, %v131
    %v144 = vpack.c.b16 %v134, %v133
    %v145 = vpack.c.b16 %v136, %v135
    %v146 = vpack.c.b16 %v138, %v137
    %155 = vmatprep.subr.bf16.mxu0 0
    %156 = vmatpush1.bf16.msra.mxu0 %v139
    %157 = vmatprep.subr.bf16.mxu0 0
    %158 = vmatpush1.bf16.msra.mxu0 %v140
    %159 = vmatprep.subr.bf16.mxu0 0
    %160 = vmatpush1.bf16.msra.mxu0 %v141
    %161 = vmatprep.subr.bf16.mxu0 0
    %162 = vmatpush1.bf16.msra.mxu0 %v142
    %163 = vmatprep.subr.bf16.mxu0 0
    %164 = vmatpush1.bf16.msra.mxu0 %v143
    %165 = vmatprep.subr.bf16.mxu0 0
    %166 = vmatpush1.bf16.msra.mxu0 %v144
    %167 = vmatprep.subr.bf16.mxu0 0
    %168 = vmatpush1.bf16.msra.mxu0 %v145
    %169 = vmatprep.subr.bf16.mxu0 0
    %170 = vmatpush1.bf16.msra.mxu0 %v146
    %171 = vmatprep.subr.bf16.mxu0 0
    %172 = vmatpush1.bf16.msra.mxu0 0
    %173 = vmatprep.subr.bf16.mxu0 0
    %174 = vmatpush1.bf16.msra.mxu0 0
    %175 = vmatprep.subr.bf16.mxu0 0
    %176 = vmatpush1.bf16.msra.mxu0 0
    %177 = vmatprep.subr.bf16.mxu0 0
    %178 = vmatpush1.bf16.msra.mxu0 0
    %179 = vmatprep.subr.bf16.mxu0 0
    %180 = vmatpush1.bf16.msra.mxu0 0
    %181 = vmatprep.subr.bf16.mxu0 0
    %182 = vmatpush1.bf16.msra.mxu0 0
    %183 = vmatprep.subr.bf16.mxu0 0
    %184 = vmatpush1.bf16.msra.mxu0 0
    %185 = vmatprep.subr.bf16.mxu0 0
    %186 = vmatpush1.bf16.msra.mxu0 0
    %187 = vmatprep.mubr.bf16.mxu0 0
    %188 = vmatmul.mubr.bf16.gmra.mrb[0].mxu0 %v105
    %v189 = vpop.f32.mrb[0].mxu0
    %v190 = vadd.f32 %v99, %v189
    %v191 = vpop.f32.mrb[0].mxu0
    %v192 = vpop.f32.mrb[0].mxu0
    %v193 = vadd.f32 %v99, %v192
    %v194 = vpop.f32.mrb[0].mxu0
    %195 = vdwg.mxu0
    %v196 = vmul.f32 %v190, 0.5
    %v197 = vmul.f32 %v193, 0.5
    %v198 = vmul.f32 %v190, 0.70710677
    %v199 = vmul.f32 %v193, 0.70710677
    %v200 = verf.f32.pop %v198
    %v201 = verf.f32.pop %v199
    %v202 = vadd.f32 %v200, 1.0
    %v203 = vadd.f32 %v201, 1.0
    %v204 = vmul.f32 %v196, %v202
    %v205 = vmul.f32 %v197, %v203
    %v206 = vld [vmem:[#allocation8] sm:$0xff]
    %v207 = vld [vmem:[#allocation8 + $0x8] sm:$0xff]
    %v208 = vpack.c.bf16 %v205, %v204
    %v209 = vld [vmem:[#allocation7] sm:$0xf]
    %v210 = vld [vmem:[#allocation7 + $0x4] sm:$0xf]
    %v211 = vld [vmem:[#allocation7 + $0x8] sm:$0xf]
    %v212 = vld [vmem:[#allocation7 + $0xc] sm:$0xf]
    %v213 = vld [vmem:[#allocation7 + $0x10] sm:$0xf]
    %v214 = vld [vmem:[#allocation7 + $0x14] sm:$0xf]
    %v215 = vld [vmem:[#allocation7 + $0x18] sm:$0xf]
    %v216 = vld [vmem:[#allocation7 + $0x1c] sm:$0xf]
    %v217 = vld [vmem:[#allocation7 + $0x20] sm:$0xf]
    %v218 = vld [vmem:[#allocation7 + $0x24] sm:$0xf]
    %v219 = vld [vmem:[#allocation7 + $0x28] sm:$0xf]
    %v220 = vld [vmem:[#allocation7 + $0x2c] sm:$0xf]
    %v221 = vld [vmem:[#allocation7 + $0x30] sm:$0xf]
    %v222 = vld [vmem:[#allocation7 + $0x34] sm:$0xf]
    %v223 = vld [vmem:[#allocation7 + $0x38] sm:$0xf]
    %v224 = vld [vmem:[#allocation7 + $0x3c] sm:$0xf]
    %v241 = vunpack.c.l.b16 %v209
    %v242 = vunpack.c.l.b16 %v210
    %v243 = vunpack.c.l.b16 %v211
    %v244 = vunpack.c.l.b16 %v212
    %v245 = vunpack.c.l.b16 %v213
    %v246 = vunpack.c.l.b16 %v214
    %v247 = vunpack.c.l.b16 %v215
    %v248 = vunpack.c.l.b16 %v216
    %v249 = vunpack.c.l.b16 %v217
    %v250 = vunpack.c.l.b16 %v218
    %v251 = vunpack.c.l.b16 %v219
    %v252 = vunpack.c.l.b16 %v220
    %v253 = vunpack.c.l.b16 %v221
    %v254 = vunpack.c.l.b16 %v222
    %v255 = vunpack.c.l.b16 %v223
    %v256 = vunpack.c.l.b16 %v224
    %v257 = vpack.c.b16 %v242, %v241
    %v258 = vpack.c.b16 %v244, %v243
    %v259 = vpack.c.b16 %v246, %v245
    %v260 = vpack.c.b16 %v248, %v247
    %v261 = vpack.c.b16 %v250, %v249
    %v262 = vpack.c.b16 %v252, %v251
    %v263 = vpack.c.b16 %v254, %v253
    %v264 = vpack.c.b16 %v256, %v255
    %273 = vmatprep.subr.bf16.mxu0 0
    %274 = vmatpush1.bf16.msra.mxu0 %v257
    %275 = vmatprep.subr.bf16.mxu0 0
    %276 = vmatpush1.bf16.msra.mxu0 %v258
    %277 = vmatprep.subr.bf16.mxu0 0
    %278 = vmatpush1.bf16.msra.mxu0 %v259
    %279 = vmatprep.subr.bf16.mxu0 0
    %280 = vmatpush1.bf16.msra.mxu0 %v260
    %281 = vmatprep.subr.bf16.mxu0 0
    %282 = vmatpush1.bf16.msra.mxu0 %v261
    %283 = vmatprep.subr.bf16.mxu0 0
    %284 = vmatpush1.bf16.msra.mxu0 %v262
    %285 = vmatprep.subr.bf16.mxu0 0
    %286 = vmatpush1.bf16.msra.mxu0 %v263
    %287 = vmatprep.subr.bf16.mxu0 0
    %288 = vmatpush1.bf16.msra.mxu0 %v264
    %289 = vmatprep.subr.bf16.mxu0 0
    %290 = vmatpush1.bf16.msra.mxu0 0
    %291 = vmatprep.subr.bf16.mxu0 0
    %292 = vmatpush1.bf16.msra.mxu0 0
    %293 = vmatprep.subr.bf16.mxu0 0
    %294 = vmatpush1.bf16.msra.mxu0 0
    %295 = vmatprep.subr.bf16.mxu0 0
    %296 = vmatpush1.bf16.msra.mxu0 0
    %297 = vmatprep.subr.bf16.mxu0 0
    %298 = vmatpush1.bf16.msra.mxu0 0
    %299 = vmatprep.subr.bf16.mxu0 0
    %300 = vmatpush1.bf16.msra.mxu0 0
    %301 = vmatprep.subr.bf16.mxu0 0
    %302 = vmatpush1.bf16.msra.mxu0 0
    %303 = vmatprep.subr.bf16.mxu0 0
    %304 = vmatpush1.bf16.msra.mxu0 0
    %305 = vmatprep.mubr.bf16.mxu0 0
    %306 = vmatmul.mubr.bf16.gmra.mrb[0].mxu0 %v208
    %v307 = vpop.f32.mrb[0].mxu0
    %v308 = vadd.f32 0.0, %v307
    %v309 = vpop.f32.mrb[0].mxu0
    %v310 = vpop.f32.mrb[0].mxu0
    %v311 = vadd.f32 0.0, %v310
    %v312 = vpop.f32.mrb[0].mxu0
    %313 = vdwg.mxu0
    %v314 = vadd.f32 %v206, %v308
    %v315 = vadd.f32 %v207, %v311
    %316 = vst [vmem:[#allocation8] sm:$0xff] %v314
    %317 = vst [vmem:[#allocation8 + $0x8] sm:$0xff] %v315
    // Predicated region
    $region38: #{tpu_custom_call.1} parent=1 // pred_check
      _
    $region39: #{tpu_custom_call.1} parent=1 // pred_check_branch
      %319 = sbr.rel (0) target = $region41
    $region40: #{tpu_custom_call.1} parent=1 // pred_region
      %s321 = ssub.s32 256, 256
      %322 = vsyncadd [#allocation4], %s321
      %s323 = sshll.u32 [#allocation8], 4
      %s324 = int_to_ptr.vmem [resolvable:$true] %s323
      %329 = dma.vmem_to_hbm [thread:$0]  %s324, 256, %s5, [#allocation4], 128, 128, 8
    $region41: #{tpu_custom_call.1} parent=1 // pred_fallthru
      _
    // Predicated region
    $region42: #{tpu_custom_call.1} parent=1 // pred_check
      _
    $region43: #{tpu_custom_call.1} parent=1 // pred_check_branch
      %331 = sbr.rel (0) target = $region45
    $region44: #{tpu_custom_call.1} parent=1 // pred_region
      %332 = dma.done [#allocation4], 256
    $region45: #{tpu_custom_call.1} parent=1 // pred_fallthru
      _
    %333 = vsyncpa [#allocation3], 1
    %334 = vsyncpa [#allocation6], 1
    %335 = vsyncpa [#allocation4], 1

</llo_original>
